<compile_context>
chip_gen: v7x
topology: tpu7x:2x2x1
jax: 0.10.0
libtpu: 0.0.40
codegen_flags: <defaults>
</compile_context>

<pallas_src>
import jax
import jax.numpy as jnp
from jax import lax
from jax.experimental import pallas as pl
from jax.experimental.pallas import tpu as pltpu


def _round_up(v, m):
    return ((v + m - 1) // m) * m


def mlp_vpu_kernel(x_ref, params_ref, b2_ref, o_ref):
    """VPU/XLU fast path (small n_feature / n_output): no MXU.

    x_ref      : (n_feature, tN)  VMEM   batch on the 128-lane axis
    params_ref : (n_hidden, n_feature + 1 + n_output)  VMEM
                 columns = [ w1 | b1 | w2^T ]  (one DMA for all weights)
    b2_ref     : (n_output,)  SMEM        second-layer bias (scalar reads)
    o_ref      : (n_output, tN)  VMEM     lane-dense output block
    """
    n_feature = x_ref.shape[0]
    n_output = o_ref.shape[0]
    n_hidden = params_ref.shape[0]
    tN = x_ref.shape[-1]

    w1 = params_ref[:, 0:n_feature]                      # (n_hidden, n_feature)
    b1 = params_ref[:, n_feature:n_feature + 1]          # (n_hidden, 1)
    w2t = params_ref[:, n_feature + 1:]                  # (n_hidden, n_output)

    # Lane sub-chunk size: keep the (n_hidden, ch) intermediate within ~half
    # the vreg file so `h` never spills to VMEM at large lane tiles.
    ch = min(tN, max(128, ((32 * 1024) // max(n_hidden, 1)) // 128 * 128))
    n_full = tN // ch
    rem = tN - n_full * ch

    def compute(xc):
        # Layer 1: K<=8 outer products as VPU broadcast-multiplies (no MXU).
        acc = w1[:, 0:1] * xc[0:1, :]
        for f in range(1, n_feature):
            acc = acc + w1[:, f:f + 1] * xc[f:f + 1, :]
        h = jnp.maximum(acc + b1, 0.0)                   # (n_hidden, ch)
        # Layer 2: VPU multiply + XLU sublane reduce per (tiny) output row.
        rows = []
        for o in range(n_output):
            y = jnp.sum(w2t[:, o:o + 1] * h, axis=0, keepdims=True)
            rows.append(y + b2_ref[o])
        return jnp.concatenate(rows, axis=0) if n_output > 1 else rows[0]

    def body(c, carry):
        off = c * ch
        xc = x_ref[:, pl.ds(off, ch)]
        o_ref[:, pl.ds(off, ch)] = compute(xc).astype(o_ref.dtype)
        return carry

    lax.fori_loop(0, n_full, body, 0, unroll=True)

    if rem:  # static tail when the tile is not a multiple of the chunk size
        off = n_full * ch
        o_ref[:, off:off + rem] = compute(
            x_ref[:, off:off + rem]).astype(o_ref.dtype)


def mlp_mxu_kernel(x_ref, w1_ref, b1_ref, w2_ref, b2_ref, o_ref):
    """General lane-dense path (large n_feature / n_output): uses the MXU.

    x_ref : (n_feature, tN), w1_ref : (n_hidden, n_feature), b1_ref : (n_hidden, 1)
    w2_ref: (n_output, n_hidden), b2_ref : (n_output, 1), o_ref : (n_output, tN)
    """
    # TODO(synk): for very large n_feature/n_hidden, add K-tiling with a VMEM
    # accumulator, single-buffer the grid-invariant weights
    # (pipeline_mode=pl.Buffered(1)) and cast inputs to bf16 so the weight
    # working set fits v7x's 64 MiB VMEM and the MXU runs at native rate.
    h = jnp.dot(w1_ref[...], x_ref[...], preferred_element_type=jnp.float32)
    h = jnp.maximum(h + b1_ref[...], 0.0)
    y = jnp.dot(w2_ref[...], h, preferred_element_type=jnp.float32)
    o_ref[...] = (y + b2_ref[...]).astype(o_ref.dtype)


def net_forward(x, w1, b1, w2, b2, *, lane_tile=8192):
    """Forward pass of Net.

    x  : (N, n_feature) f32
    w1 : (n_hidden, n_feature), b1 : (n_hidden,)     (PyTorch layout)
    w2 : (n_output, n_hidden),  b2 : (n_output,)
    Returns (N, n_output) f32.
    """
    N, n_feature = x.shape
    n_hidden = w1.shape[0]
    n_output = w2.shape[0]

    # The lane tile must be a multiple of 128 (vreg lane width).
    lane_tile = max(128, _round_up(int(lane_tile), 128))

    # Lane-dense layout: the batch lives on the 128-lane axis.  For
    # n_feature == 1 this is a free reshape (no extra HBM pass); otherwise a
    # small transpose of the input only.
    x32 = x.astype(jnp.float32)
    x_t = x32.reshape(1, N) if n_feature == 1 else x32.T      # (n_feature, N)

    if N <= lane_tile:
        tN, grid = N, (1,)                 # one block == full array (no masking)
    else:
        tN, grid = lane_tile, (pl.cdiv(N, lane_tile),)  # Pallas masks the edge block

    cparams = pltpu.CompilerParams(
        # "parallel" lets v7x shard grid steps across its two TensorCores; for
        # a single step it is irrelevant, so keep "arbitrary" there.
        dimension_semantics=("arbitrary",) if grid[0] == 1 else ("parallel",))

    if n_feature <= 8 and n_output <= 8:
        # Regression-style shapes: K<=8 / M<=8 matmuls would leave the MXU
        # <5% utilized, so use the pure VPU/XLU kernel.
        params = jnp.concatenate(
            [w1.astype(jnp.float32),
             b1.reshape(n_hidden, 1).astype(jnp.float32),
             w2.astype(jnp.float32).T], axis=1)          # (n_hidden, nf+1+no)
        n_cols = n_feature + 1 + n_output
        b2s = b2.astype(jnp.float32).reshape(n_output)
        out_t = pl.pallas_call(
            mlp_vpu_kernel,
            out_shape=jax.ShapeDtypeStruct((n_output, N), jnp.float32),
            grid_spec=pltpu.PrefetchScalarGridSpec(
                num_scalar_prefetch=0,
                grid=grid,
                in_specs=[
                    pl.BlockSpec((n_feature, tN), lambda i: (0, i)),     # x (lanes)
                    pl.BlockSpec((n_hidden, n_cols), lambda i: (0, 0)),  # packed weights
                    pl.BlockSpec(memory_space=pltpu.MemorySpace.SMEM),   # b2 scalars
                ],
                out_specs=pl.BlockSpec((n_output, tN), lambda i: (0, i)),
            ),
            compiler_params=cparams,
        )(x_t, params, b2s)
    else:
        # General shapes: MXU matmuls, still lane-dense on the batch axis.
        out_t = pl.pallas_call(
            mlp_mxu_kernel,
            out_shape=jax.ShapeDtypeStruct((n_output, N), jnp.float32),
            grid_spec=pltpu.PrefetchScalarGridSpec(
                num_scalar_prefetch=0,
                grid=grid,
                in_specs=[
                    pl.BlockSpec((n_feature, tN), lambda i: (0, i)),
                    pl.BlockSpec((n_hidden, n_feature), lambda i: (0, 0)),
                    pl.BlockSpec((n_hidden, 1), lambda i: (0, 0)),
                    pl.BlockSpec((n_output, n_hidden), lambda i: (0, 0)),
                    pl.BlockSpec((n_output, 1), lambda i: (0, 0)),
                ],
                out_specs=pl.BlockSpec((n_output, tN), lambda i: (0, i)),
            ),
            compiler_params=cparams,
        )(x_t,
          w1.astype(jnp.float32),
          b1.reshape(n_hidden, 1).astype(jnp.float32),
          w2.astype(jnp.float32),
          b2.reshape(n_output, 1).astype(jnp.float32))

    # (n_output, N) -> (N, n_output); free reshape when n_output == 1.
    return out_t.reshape(N, 1) if n_output == 1 else out_t.T


def init_params(key, n_feature, n_hidden, n_output):
    """Deterministic init mimicking torch.nn.Linear's U(-1/sqrt(fan_in), ...)."""
    k1, k2, k3, k4 = jax.random.split(key, 4)
    bound1 = 1.0 / jnp.sqrt(jnp.float32(n_feature))
    bound2 = 1.0 / jnp.sqrt(jnp.float32(n_hidden))
    w1 = jax.random.uniform(k1, (n_hidden, n_feature), jnp.float32, -bound1, bound1)
    b1 = jax.random.uniform(k2, (n_hidden,), jnp.float32, -bound1, bound1)
    w2 = jax.random.uniform(k3, (n_output, n_hidden), jnp.float32, -bound2, bound2)
    b2 = jax.random.uniform(k4, (n_output,), jnp.float32, -bound2, bound2)
    return w1, b1, w2, b2


if __name__ == "__main__":
    # Shapes implied by the module usage: x = unsqueeze(linspace(-2, 2, 100), 1)
    N, n_feature, n_hidden, n_output = 100, 1, 32, 1
    key = jax.random.PRNGKey(0)
    w1, b1, w2, b2 = init_params(key, n_feature, n_hidden, n_output)
    x = jnp.linspace(-2.0, 2.0, N, dtype=jnp.float32)[:, None]

    out = jax.block_until_ready(net_forward(x, w1, b1, w2, b2))
    ref = jnp.maximum(x @ w1.T + b1[None, :], 0.0) @ w2.T + b2[None, :]
    assert out.shape == (N, n_output)
    assert jnp.allclose(out, ref, atol=1e-5, rtol=1e-5)

    # Multi-block fast path: large batch, partial edge block, "parallel" grid.
    N2 = 20000
    x2 = jax.random.normal(jax.random.PRNGKey(1), (N2, 1), jnp.float32)
    out2 = jax.block_until_ready(net_forward(x2, w1, b1, w2, b2))
    ref2 = jnp.maximum(x2 @ w1.T + b1[None, :], 0.0) @ w2.T + b2[None, :]
    assert out2.shape == (N2, 1)
    assert jnp.allclose(out2, ref2, atol=1e-4, rtol=1e-4)

    # Widened VPU fast path (small n_feature / n_output > 1).
    wf1, bf1, wf2, bf2 = init_params(jax.random.PRNGKey(2), 3, 16, 2)
    x3 = jax.random.normal(jax.random.PRNGKey(3), (50, 3), jnp.float32)
    out3 = jax.block_until_ready(net_forward(x3, wf1, bf1, wf2, bf2))
    ref3 = jnp.maximum(x3 @ wf1.T + bf1[None, :], 0.0) @ wf2.T + bf2[None, :]
    assert out3.shape == (50, 2)
    assert jnp.allclose(out3, ref3, atol=1e-4, rtol=1e-4)

    # General MXU path (larger feature/output dims).
    wg1, bg1, wg2, bg2 = init_params(jax.random.PRNGKey(4), 16, 128, 16)
    xg = jax.random.normal(jax.random.PRNGKey(5), (256, 16), jnp.float32)
    outg = jax.block_until_ready(net_forward(xg, wg1, bg1, wg2, bg2))
    refg = jnp.maximum(xg @ wg1.T + bg1[None, :], 0.0) @ wg2.T + bg2[None, :]
    assert outg.shape == (256, 16)
    assert jnp.allclose(outg, refg, atol=2e-2, rtol=2e-2)

    print("KERNEL_OK")
</pallas_src>

<mosaic_0001>
module attributes {stable_mosaic.version = 11 : i64} {
  func.func @mlp_vpu_kernel(%arg0: i32, %arg1: memref<1x100xf32, #tpu.memory_space<vmem>>, %arg2: memref<32x3xf32, #tpu.memory_space<vmem>>, %arg3: memref<1xf32, #tpu.memory_space<smem>>, %arg4: memref<1x100xf32, #tpu.memory_space<vmem>>) attributes {dimension_semantics = [#tpu.dimension_semantics<arbitrary>], iteration_bounds = array<i64: 1>, scalar_prefetch = 0 : i64, scratch_operands = 0 : i64, tpu.core_type = #tpu.core_type<tc>, window_params = [{transform_indices = @transform_0, window_bounds = array<i64: 1, 100>}, {pipeline_mode = #tpu.pipeline_mode<synchronous>, transform_indices = @transform_1, window_bounds = array<i64: 32, 3>}, {transform_indices = @transform_2, window_bounds = array<i64: 1>}, {transform_indices = @transform_3, window_bounds = array<i64: 1, 100>}]} {
    %c0 = arith.constant 0 : index
    %c0_0 = arith.constant 0 : index
    %0 = vector.load %arg2[%c0, %c0_0] : memref<32x3xf32, #tpu.memory_space<vmem>>, vector<32x1xf32>
    %c0_1 = arith.constant 0 : index
    %c1 = arith.constant 1 : index
    %1 = vector.load %arg2[%c0_1, %c1] : memref<32x3xf32, #tpu.memory_space<vmem>>, vector<32x1xf32>
    %c0_2 = arith.constant 0 : index
    %c2 = arith.constant 2 : index
    %2 = vector.load %arg2[%c0_2, %c2] : memref<32x3xf32, #tpu.memory_space<vmem>>, vector<32x1xf32>
    %c0_i32 = arith.constant 0 : i32
    %c100_i32 = arith.constant 100 : i32
    %3 = arith.muli %c0_i32, %c100_i32 : i32
    %c0_3 = arith.constant 0 : index
    %4 = arith.index_cast %3 : i32 to index
    %5 = vector.load %arg1[%c0_3, %4] : memref<1x100xf32, #tpu.memory_space<vmem>>, vector<1x100xf32>
    %6 = vector.broadcast %0 : vector<32x1xf32> to vector<32x100xf32>
    %7 = vector.broadcast %5 : vector<1x100xf32> to vector<32x100xf32>
    %8 = arith.mulf %6, %7 : vector<32x100xf32>
    %9 = vector.broadcast %1 : vector<32x1xf32> to vector<32x100xf32>
    %10 = arith.addf %8, %9 : vector<32x100xf32>
    %cst = arith.constant 0.000000e+00 : f32
    %11 = vector.broadcast %cst : f32 to vector<32x100xf32>
    %12 = arith.maximumf %10, %11 : vector<32x100xf32>
    %13 = vector.broadcast %2 : vector<32x1xf32> to vector<32x100xf32>
    %14 = arith.mulf %13, %12 : vector<32x100xf32>
    %cst_4 = arith.constant dense<0.000000e+00> : vector<100xf32>
    %15 = vector.multi_reduction <add>, %14, %cst_4 [0] : vector<32x100xf32> to vector<100xf32>
    %16 = vector.shape_cast %15 : vector<100xf32> to vector<1x100xf32>
    %c0_5 = arith.constant 0 : index
    %17 = memref.load %arg3[%c0_5] : memref<1xf32, #tpu.memory_space<smem>>
    %18 = vector.broadcast %17 : f32 to vector<1x100xf32>
    %19 = arith.addf %16, %18 : vector<1x100xf32>
    %c0_6 = arith.constant 0 : index
    %20 = arith.index_cast %3 : i32 to index
    %21 = vector.load %arg4[%c0_6, %20] : memref<1x100xf32, #tpu.memory_space<vmem>>, vector<1x100xf32>
    tpu.vector_store %arg4[%c0_6, %20], %19 {strides = array<i32>} : memref<1x100xf32, #tpu.memory_space<vmem>>, vector<1x100xf32>,
    %c1_i32 = arith.constant 1 : i32
    return
  }
  func.func @transform_0(%arg0: i32) -> (i32, i32) {
    %c0_i32 = arith.constant 0 : i32
    %c0_i32_0 = arith.constant 0 : i32
    return %c0_i32, %arg0 : i32, i32
  }
  func.func @transform_1(%arg0: i32) -> (i32, i32) {
    %c0_i32 = arith.constant 0 : i32
    %c0_i32_0 = arith.constant 0 : i32
    %c0_i32_1 = arith.constant 0 : i32
    return %c0_i32, %c0_i32_0 : i32, i32
  }
  func.func @transform_2(%arg0: i32) -> i32 {
    %c0_i32 = arith.constant 0 : i32
    %c0_i32_0 = arith.constant 0 : i32
    return %c0_i32 : i32
  }
  func.func @transform_3(%arg0: i32) -> (i32, i32) {
    %c0_i32 = arith.constant 0 : i32
    %c0_i32_0 = arith.constant 0 : i32
    return %c0_i32, %arg0 : i32, i32
  }
}

</mosaic_0001>

<llo_original>
// kernel: tpu_custom_call.1
$region0: #{tpu_custom_call.1}
  #allocation0 [shape = 'u32[]', space=smem, size = 0x4, offset = 0x4, fixed_abs, tag = 'smem constant byte address 0x4 - core index']
  #allocation1 [shape = 'u32[144,128]{1,0:T(1,128)}', space=vmem, size = 0x12000, scoped, tag = 'internal scratch']
  #allocation2 [shape = 'f32[1]{0:T(128)S(6)}', space=smem, size = 0x200, scoped, tag = 'scoped memory for tpu_custom_call.1']
  %s0 = inlined_call_operand.vmem [shape: f32[1,100], index: 0, kind: input, shape index: {}]
  %s1 = inlined_call_operand.vmem [shape: f32[32,3], index: 1, kind: input, shape index: {}]
  %s2 = inlined_call_operand.<no memory space> [shape: f32[1], index: 2, kind: input, shape index: {}]
  %s3 = inlined_call_operand.hbm [shape: f32[1,100], index: 3, kind: output, shape index: {}]
  %s4 = sld [smem:[#allocation0]]
  $region22: #{tpu_custom_call.1} parent=0
    _
  %s6 = ssub.s32 1, %s4
  %s7 = scalar_select 0, %s6, %s4
  %8 = sst [smem:[#allocation2]] %s2
  $region1: #{tpu_custom_call.1} parent=0
    #allocation3 [shape = 'u8[512]{0}', space=vmem, size = 0x400, scoped, tag = 'output window, operand 0, single buffered']
    #allocation4 [shape = 's32[1]{0}', space=sflag, size = 0x4, scoped, tag = 'scoped memory for tpu_custom_call.1']
    %9 = vsyncpa [#allocation4], 0
    // Predicated region
    $region2: #{tpu_custom_call.1} parent=1 // pred_check
      _
    $region3: #{tpu_custom_call.1} parent=1 // pred_check_branch
      %11 = sbr.rel (0) target = $region5
    $region4: #{tpu_custom_call.1} parent=1 // pred_region
      _
    $region5: #{tpu_custom_call.1} parent=1 // pred_fallthru
      _
    // Predicated region
    $region6: #{tpu_custom_call.1} parent=1 // pred_check
      _
    $region7: #{tpu_custom_call.1} parent=1 // pred_check_branch
      %13 = sbr.rel (0) target = $region9
    $region8: #{tpu_custom_call.1} parent=1 // pred_region
      _
    $region9: #{tpu_custom_call.1} parent=1 // pred_fallthru
      _
    // Predicated region
    $region10: #{tpu_custom_call.1} parent=1 // pred_check
      _
    $region11: #{tpu_custom_call.1} parent=1 // pred_check_branch
      %15 = sbr.rel (0) target = $region13
    $region12: #{tpu_custom_call.1} parent=1 // pred_region
      _
    $region13: #{tpu_custom_call.1} parent=1 // pred_fallthru
      _
    %v16 = vld [vmem:[%s1] sm:$0xff]
    %v17 = vld [vmem:[%s1 + $0x8] sm:$0xff]
    %v18 = vld [vmem:[%s1 + $0x10] sm:$0xff]
    %v19 = vld [vmem:[%s1 + $0x18] sm:$0xff]
    %v20 = vld [vmem:[%s0] sm:$0x1]
    %22 = vset.pattern.permute.xlu0 0
    %23 = vperm.xlu0 %22, %v16
    %v24 = vpop.permute.xlu0 %23
    %27 = vset.pattern.permute.xlu0 0
    %28 = vperm.xlu0 %27, %v17
    %v29 = vpop.permute.xlu0 %28
    %32 = vset.pattern.permute.xlu0 0
    %33 = vperm.xlu0 %32, %v18
    %v34 = vpop.permute.xlu0 %33
    %37 = vset.pattern.permute.xlu0 0
    %38 = vperm.xlu0 %37, %v19
    %v39 = vpop.permute.xlu0 %38
    %v42 = vlaneseq
    %v43 = vshrl.u32 %v42, 7
    %v44 = vsub.s32 0, %v43
    %v45 = vrot.slane %v20, %v44
    %v47 = vmul.f32 %v24, %v45
    %v48 = vmul.f32 %v29, %v45
    %v49 = vmul.f32 %v34, %v45
    %v50 = vmul.f32 %v39, %v45
    %51 = vset.pattern.permute.xlu0 1
    %52 = vperm.xlu0 %51, %v16
    %v53 = vpop.permute.xlu0 %52
    %55 = vset.pattern.permute.xlu0 1
    %56 = vperm.xlu0 %55, %v17
    %v57 = vpop.permute.xlu0 %56
    %59 = vset.pattern.permute.xlu0 1
    %60 = vperm.xlu0 %59, %v18
    %v61 = vpop.permute.xlu0 %60
    %63 = vset.pattern.permute.xlu0 1
    %64 = vperm.xlu0 %63, %v19
    %v65 = vpop.permute.xlu0 %64
    %v67 = vadd.f32 %v47, %v53
    %v68 = vadd.f32 %v48, %v57
    %v69 = vadd.f32 %v49, %v61
    %v70 = vadd.f32 %v50, %v65
    %v71 = vmax.f32 %v67, 0.0
    %v72 = vmax.f32 %v68, 0.0
    %v73 = vmax.f32 %v69, 0.0
    %v74 = vmax.f32 %v70, 0.0
    %75 = vset.pattern.permute.xlu0 2
    %76 = vperm.xlu0 %75, %v16
    %v77 = vpop.permute.xlu0 %76
    %79 = vset.pattern.permute.xlu0 2
    %80 = vperm.xlu0 %79, %v17
    %v81 = vpop.permute.xlu0 %80
    %83 = vset.pattern.permute.xlu0 2
    %84 = vperm.xlu0 %83, %v18
    %v85 = vpop.permute.xlu0 %84
    %87 = vset.pattern.permute.xlu0 2
    %88 = vperm.xlu0 %87, %v19
    %v89 = vpop.permute.xlu0 %88
    %v91 = vmul.f32 %v77, %v71
    %v92 = vmul.f32 %v81, %v72
    %v93 = vmul.f32 %v85, %v73
    %v94 = vmul.f32 %v89, %v74
    %vm95 = vcmask 818176
    %v96 = vsel %vm95, %v91, 0.0
    %v97 = vsel %vm95, %v92, 0.0
    %v98 = vadd.f32 %v96, %v97
    %v99 = vsel %vm95, %v93, 0.0
    %v100 = vadd.f32 %v98, %v99
    %v101 = vsel %vm95, %v94, 0.0
    %v102 = vadd.f32 %v100, %v101
    %v103 = vrot.slane %v102, 4
    %v104 = vadd.f32 %v102, %v103
    %v105 = vrot.slane %v104, 2
    %v106 = vadd.f32 %v104, %v105
    %v107 = vrot.slane %v106, 1
    %v108 = vadd.f32 %v106, %v107
    %s109 = sld [smem:[#allocation2]]
    %v110 = vstv %s109
    %v111 = vadd.f32 %v108, %v110
    %vm112 = vcmask 811008
    %113 = vst.msk [vmem:[#allocation3] sm:$0x1] %vm112, %v111
    // Predicated region
    $region14: #{tpu_custom_call.1} parent=1 // pred_check
      _
    $region15: #{tpu_custom_call.1} parent=1 // pred_check_branch
      %115 = sbr.rel (0) target = $region17
    $region16: #{tpu_custom_call.1} parent=1 // pred_region
      %s117 = ssub.s32 16, 16
      %118 = vsyncadd [#allocation4], %s117
      %s120 = sshll.u32 [#allocation3], 4
      %s121 = int_to_ptr.vmem [resolvable:$true] %s120
      %123 = dma.vmem_to_hbm [thread:$0]  %s121, 16, %s3, [#allocation4]
    $region17: #{tpu_custom_call.1} parent=1 // pred_fallthru
      _
    // Predicated region
    $region18: #{tpu_custom_call.1} parent=1 // pred_check
      _
    $region19: #{tpu_custom_call.1} parent=1 // pred_check_branch
      %125 = sbr.rel (0) target = $region21
    $region20: #{tpu_custom_call.1} parent=1 // pred_region
      %126 = dma.done [#allocation4], 16
    $region21: #{tpu_custom_call.1} parent=1 // pred_fallthru
      _
    %127 = vsyncpa [#allocation4], 1

</llo_original>
